<compile_context>
chip_gen: v6e
topology: v6e:2x2x1
jax: 0.10.0
libtpu: 0.0.40
codegen_flags: <defaults>
</compile_context>

<pallas_src>
import jax
import jax.numpy as jnp
from jax.experimental import pallas as pl
from jax.experimental.pallas import tpu as pltpu

# ---- fixed (non-trainable) constants from `feed` ----------------------------
U1 = -1.2
U2 = 18.0
U3 = 12.0
U4 = 17.4
V1 = 120.0
V2 = -84.0
VL = -60.0
I_EXT = 60.0
# args.wscale is a CLI arg in the original script; fix it deterministically.
WSCALE = 1.0

# ---- trainable parameters: 0.5 * feed value (deterministic init) ------------
# order: [g1, g2, gL, tau_w]
PARAMS_INIT = jnp.array([0.5 * 4.0, 0.5 * 8.0, 0.5 * 2.0, 0.5 * 15.0],
                        dtype=jnp.float32)

LANES = 128


# -----------------------------------------------------------------------------
# Shared math: scalar hoisting on the SMEM path + vector RHS on the VPU/EUP.
# -----------------------------------------------------------------------------
def _load_scalars(params_ref):
    """Read trainable scalars once; hoist all scalar algebra off the vector path."""
    g1 = params_ref[0]
    g2 = params_ref[1]
    gL = params_ref[2]
    inv_tau_w = 1.0 / params_ref[3]      # the single scalar divide
    hg1 = 0.5 * g1                       # folds the 0.5*(1+tanh) of m into t1
    g2s = g2 * (1.0 / WSCALE)            # g2 / wscale
    c0 = gL * VL + I_EXT                 # constant term of dV
    return hg1, g2s, gL, inv_tau_w, c0


def _ml_rhs(v, w, hg1, g2s, gL, inv_tau_w, c0):
    """Morris-Lecar RHS on dense f32 tiles. Returns (dV, dw)."""
    # m = 1/(1+exp(2*(U1-v)/U2)) = 0.5*(1 + tanh((v-U1)/U2))   (exact identity)
    # t1 = g1*m = hg1 + hg1*tanh(...)
    t1 = hg1 + hg1 * jnp.tanh((v - U1) * (1.0 / U2))
    t2 = g2s * w

    # dV = -t1*(v-V1) - t2*(v-V2) - gL*(v-VL) + I
    #    = (t1*V1 + t2*V2 + c0) - (t1 + t2 + gL)*v        (fewer VALU ops)
    dv = (t1 * V1 + t2 * V2 + c0) - (t1 + t2 + gL) * v

    # One tanh of the half-argument gives both cosh and wst exactly:
    #   th  = tanh((v-U3)/(2*U4))
    #   ch  = cosh((v-U3)/(2*U4)) = rsqrt(1 - th^2)
    #   wst = 0.5*(1 + tanh((v-U3)/U4)) = 0.5 + th/(1 + th^2)
    th = jnp.tanh((v - U3) * (1.0 / (2.0 * U4)))
    th2 = th * th
    ch = jax.lax.rsqrt(1.0 - th2)
    wst = 0.5 + th / (1.0 + th2)   # exact divide (well-conditioned; approx recip optional)

    # dw = wscale*(wst - w/wscale)/tau = (wscale*wst - w) * cosh(.) / tau_w
    scaled_wst = wst if WSCALE == 1.0 else WSCALE * wst   # folded at trace time
    dw = (scaled_wst - w) * (ch * inv_tau_w)
    return dv, dw


# -----------------------------------------------------------------------------
# Kernels.
# -----------------------------------------------------------------------------
def _ml_interleaved_kernel(params_ref, x_ref, dx_ref):
    """AoS tiles: even lanes carry V, odd lanes carry w (free reshape of (N, 2)).

    params_ref: SMEM (4,) f32 = [g1, g2, gL, tau_w]
    x_ref, dx_ref: VMEM (tile_r, 128) f32, V/w interleaved along lanes.
    """
    hg1, g2s, gL, inv_tau_w, c0 = _load_scalars(params_ref)

    x = x_ref[...]
    lane = jax.lax.broadcasted_iota(jnp.int32, x.shape, 1)
    even = (lane & 1) == 0

    # De-interleave with XLU lane rotations (free slot vs the VALU path).
    # Each lane j needs its pair partner at lane (j ^ 1); the select on the
    # rotated lane-index makes this independent of the rotate direction.
    r_a = pltpu.roll(x, 1, axis=1)
    r_b = pltpu.roll(x, LANES - 1, axis=1)
    src_a = pltpu.roll(lane, 1, axis=1)              # source lane of each r_a element
    partner = jnp.where(src_a == (lane ^ 1), r_a, r_b)

    v = jnp.where(even, x, partner)
    w = jnp.where(even, partner, x)

    dv, dw = _ml_rhs(v, w, hg1, g2s, gL, inv_tau_w, c0)
    dx_ref[...] = jnp.where(even, dv, dw)            # re-interleave: one lane-dense store


def _ml_planar_kernel(params_ref, v_ref, w_ref, dv_ref, dw_ref):
    """SoA tiles: V and w travel as separate dense (tile_r, 128) slabs."""
    hg1, g2s, gL, inv_tau_w, c0 = _load_scalars(params_ref)
    dv, dw = _ml_rhs(v_ref[...], w_ref[...], hg1, g2s, gL, inv_tau_w, c0)
    dv_ref[...] = dv
    dw_ref[...] = dw


# -----------------------------------------------------------------------------
# Tile sizing: >= 2 "parallel" grid steps (v7x megacore), ~8 steps for big
# inputs (pipelining), tiles capped at 1024 rows.
# -----------------------------------------------------------------------------
def _choose_tile_rows(rows):
    if rows < 16:
        return 8
    target_steps = 8 if rows >= 64 else 2
    return max(8, min(1024, (rows // target_steps) // 8 * 8))


def _divisor_tile_rows(rows):
    """Largest tile <= heuristic that exactly divides `rows` (rows % 8 == 0)."""
    t = max(8, min(_choose_tile_rows(rows), rows))
    while rows % t:
        t -= 8
    return max(t, 8)


# -----------------------------------------------------------------------------
# SoA entry point (preferred for integrators that keep V/w as dense slabs).
# -----------------------------------------------------------------------------
def morris_lecar_rhs_planar(v2, w2, params=PARAMS_INIT, tile_rows=None):
    """RHS on the SoA layout: v2, w2 of shape (rows, 128) f32 with rows % 8 == 0."""
    rows, lanes = v2.shape
    assert lanes == LANES and rows % 8 == 0 and w2.shape == v2.shape
    tile_r = tile_rows if tile_rows is not None else _divisor_tile_rows(rows)
    assert rows % tile_r == 0, "rows must be a multiple of tile_r"
    grid = (rows // tile_r,)
    tile_spec = pl.BlockSpec((tile_r, LANES), lambda i: (i, 0))

    return pl.pallas_call(
        _ml_planar_kernel,
        grid=grid,
        out_shape=(jax.ShapeDtypeStruct((rows, LANES), jnp.float32),
                   jax.ShapeDtypeStruct((rows, LANES), jnp.float32)),
        in_specs=[pl.BlockSpec(memory_space=pltpu.SMEM),   # trainable scalars
                  tile_spec, tile_spec],
        out_specs=(tile_spec, tile_spec),
        compiler_params=pltpu.CompilerParams(
            dimension_semantics=("parallel",)),
    )(params, v2, w2)


# -----------------------------------------------------------------------------
# AoS entry point: module-faithful forward on (N, 2) arrays.
# -----------------------------------------------------------------------------
def _morris_lecar_rhs_interleaved(params, x2, tile_r):
    rows = x2.shape[0]
    grid = (rows // tile_r,)
    tile_spec = pl.BlockSpec((tile_r, LANES), lambda i: (i, 0))
    return pl.pallas_call(
        _ml_interleaved_kernel,
        grid=grid,
        out_shape=jax.ShapeDtypeStruct((rows, LANES), jnp.float32),
        in_specs=[pl.BlockSpec(memory_space=pltpu.SMEM), tile_spec],
        out_specs=tile_spec,
        compiler_params=pltpu.CompilerParams(
            dimension_semantics=("parallel",)),
    )(params, x2)


def true_ode_func(t, y, params=PARAMS_INIT):
    """Module forward: y (N, 2) f32 -> dy/dt (N, 2) f32. `t` is unused (as in torch)."""
    del t
    y = jnp.asarray(y, jnp.float32)
    n = y.shape[0]
    total = 2 * n
    flat = y.reshape(total)                     # free contiguous reshape: [V0,w0,V1,w1,...]

    rows = pl.cdiv(total, LANES)
    tile_r = _choose_tile_rows(rows)
    rows_pad = pl.cdiv(rows, tile_r) * tile_r
    pad = rows_pad * LANES - total
    if pad:                                     # only awkward N pays a pad pass
        flat = jnp.pad(flat, (0, pad))
    x2 = flat.reshape(rows_pad, LANES)          # V on even lanes, w on odd lanes

    dx2 = _morris_lecar_rhs_interleaved(params, x2, tile_r)

    out = dx2.reshape(rows_pad * LANES)
    if pad:
        out = out[:total]
    return out.reshape(n, 2)                    # free contiguous reshape back to AoS


# -----------------------------------------------------------------------------
# Pure-JAX reference mirroring the PyTorch forward (exp / cosh formulation).
# -----------------------------------------------------------------------------
def _reference(t, y, params=PARAMS_INIT):
    del t
    g1, g2, gL, tau_w = params
    v = y[:, 0]
    w = y[:, 1]
    m = 1.0 / (1.0 + jnp.exp(2.0 * (U1 - v) / U2))
    wst = 1.0 / (1.0 + jnp.exp(2.0 * (U3 - v) / U4))
    tau = tau_w / jnp.cosh((v - U3) / (2.0 * U4))
    dv = -g1 * m * (v - V1) - g2 * (w / WSCALE) * (v - V2) - gL * (v - VL) + I_EXT
    dw = WSCALE * (wst - w / WSCALE) / tau
    return jnp.stack([dv, dw], axis=-1)


if __name__ == "__main__":
    key = jax.random.PRNGKey(0)
    kv, kw = jax.random.split(key)
    t = jnp.float32(0.0)

    # --- AoS path (module-faithful forward): N=2048 -> rows=32, grid=(2,) ----
    N = 2048
    v0 = 20.0 * jax.random.normal(kv, (N,), dtype=jnp.float32)
    w0 = jax.random.uniform(kw, (N,), dtype=jnp.float32)
    y = jnp.stack([v0, w0], axis=-1)            # (N, 2)

    dy = jax.block_until_ready(true_ode_func(t, y))
    ref = _reference(t, y)
    assert dy.shape == y.shape and dy.dtype == jnp.float32
    # atol=1e-3 absorbs f32 term-regrouping noise vs. the exp/cosh reference
    # (dV intermediates are O(100)); any formula error would be O(1)+.
    assert jnp.allclose(dy, ref, rtol=1e-4, atol=1e-3)

    # --- SoA path (preferred integrator layout): (16, 128) slabs, grid=(2,) --
    v2 = v0.reshape(16, LANES)
    w2 = w0.reshape(16, LANES)
    dv2, dw2 = jax.block_until_ready(morris_lecar_rhs_planar(v2, w2))
    assert jnp.allclose(dv2.reshape(-1), ref[:, 0], rtol=1e-4, atol=1e-3)
    assert jnp.allclose(dw2.reshape(-1), ref[:, 1], rtol=1e-4, atol=1e-3)

    print("KERNEL_OK")
</pallas_src>

<mosaic_0001>
module attributes {stable_mosaic.version = 11 : i64} {
  func.func @_ml_interleaved_kernel(%arg0: i32, %arg1: memref<4xf32, #tpu.memory_space<smem>>, %arg2: memref<16x128xf32, #tpu.memory_space<vmem>>, %arg3: memref<16x128xf32, #tpu.memory_space<vmem>>) attributes {dimension_semantics = [#tpu.dimension_semantics<parallel>], iteration_bounds = array<i64: 2>, scalar_prefetch = 0 : i64, scratch_operands = 0 : i64, tpu.core_type = #tpu.core_type<tc>, window_params = [{transform_indices = @transform_0, window_bounds = array<i64: 4>}, {transform_indices = @transform_1, window_bounds = array<i64: 16, 128>}, {transform_indices = @transform_2, window_bounds = array<i64: 16, 128>}]} {
    %c0 = arith.constant 0 : index
    %0 = memref.load %arg1[%c0] : memref<4xf32, #tpu.memory_space<smem>>
    %c1 = arith.constant 1 : index
    %1 = memref.load %arg1[%c1] : memref<4xf32, #tpu.memory_space<smem>>
    %c2 = arith.constant 2 : index
    %2 = memref.load %arg1[%c2] : memref<4xf32, #tpu.memory_space<smem>>
    %c3 = arith.constant 3 : index
    %3 = memref.load %arg1[%c3] : memref<4xf32, #tpu.memory_space<smem>>
    %cst = arith.constant 1.000000e+00 : f32
    %4 = arith.divf %cst, %3 : f32
    %cst_0 = arith.constant 5.000000e-01 : f32
    %5 = arith.mulf %cst_0, %0 : f32
    %cst_1 = arith.constant 1.000000e+00 : f32
    %6 = arith.mulf %1, %cst_1 : f32
    %cst_2 = arith.constant -6.000000e+01 : f32
    %7 = arith.mulf %2, %cst_2 : f32
    %cst_3 = arith.constant 6.000000e+01 : f32
    %8 = arith.addf %7, %cst_3 : f32
    %c0_4 = arith.constant 0 : index
    %c0_5 = arith.constant 0 : index
    %9 = vector.load %arg2[%c0_4, %c0_5] : memref<16x128xf32, #tpu.memory_space<vmem>>, vector<16x128xf32>
    %10 = tpu.iota {dimensions = array<i32: 1>} : vector<16x128xi32>
    %c1_i32 = arith.constant 1 : i32
    %11 = vector.broadcast %c1_i32 : i32 to vector<16x128xi32>
    %12 = arith.andi %10, %11 : vector<16x128xi32>
    %c0_i32 = arith.constant 0 : i32
    %13 = vector.broadcast %c0_i32 : i32 to vector<16x128xi32>
    %14 = arith.cmpi eq, %12, %13 : vector<16x128xi32>
    %c1_i32_6 = arith.constant 1 : i32
    %15 = tpu.dynamic_rotate %9 by %c1_i32_6 dim 1 : vector<16x128xf32>, i32 -> vector<16x128xf32>
    %c127_i32 = arith.constant 127 : i32
    %16 = tpu.dynamic_rotate %9 by %c127_i32 dim 1 : vector<16x128xf32>, i32 -> vector<16x128xf32>
    %c1_i32_7 = arith.constant 1 : i32
    %17 = tpu.dynamic_rotate %10 by %c1_i32_7 dim 1 : vector<16x128xi32>, i32 -> vector<16x128xi32>
    %c1_i32_8 = arith.constant 1 : i32
    %18 = vector.broadcast %c1_i32_8 : i32 to vector<16x128xi32>
    %19 = arith.xori %10, %18 : vector<16x128xi32>
    %20 = arith.cmpi eq, %17, %19 : vector<16x128xi32>
    %21 = arith.select %20, %15, %16 : vector<16x128xi1>, vector<16x128xf32>
    %22 = arith.select %14, %9, %21 : vector<16x128xi1>, vector<16x128xf32>
    %23 = arith.select %14, %21, %9 : vector<16x128xi1>, vector<16x128xf32>
    %cst_9 = arith.constant -1.200000e+00 : f32
    %24 = vector.broadcast %cst_9 : f32 to vector<16x128xf32>
    %25 = arith.subf %22, %24 : vector<16x128xf32>
    %cst_10 = arith.constant 0.055555556 : f32
    %26 = vector.broadcast %cst_10 : f32 to vector<16x128xf32>
    %27 = arith.mulf %25, %26 : vector<16x128xf32>
    %28 = math.tanh %27 : vector<16x128xf32>
    %29 = vector.broadcast %5 : f32 to vector<16x128xf32>
    %30 = arith.mulf %29, %28 : vector<16x128xf32>
    %31 = vector.broadcast %5 : f32 to vector<16x128xf32>
    %32 = arith.addf %31, %30 : vector<16x128xf32>
    %33 = vector.broadcast %6 : f32 to vector<16x128xf32>
    %34 = arith.mulf %33, %23 : vector<16x128xf32>
    %cst_11 = arith.constant 1.200000e+02 : f32
    %35 = vector.broadcast %cst_11 : f32 to vector<16x128xf32>
    %36 = arith.mulf %32, %35 : vector<16x128xf32>
    %cst_12 = arith.constant -8.400000e+01 : f32
    %37 = vector.broadcast %cst_12 : f32 to vector<16x128xf32>
    %38 = arith.mulf %34, %37 : vector<16x128xf32>
    %39 = arith.addf %36, %38 : vector<16x128xf32>
    %40 = vector.broadcast %8 : f32 to vector<16x128xf32>
    %41 = arith.addf %39, %40 : vector<16x128xf32>
    %42 = arith.addf %32, %34 : vector<16x128xf32>
    %43 = vector.broadcast %2 : f32 to vector<16x128xf32>
    %44 = arith.addf %42, %43 : vector<16x128xf32>
    %45 = arith.mulf %44, %22 : vector<16x128xf32>
    %46 = arith.subf %41, %45 : vector<16x128xf32>
    %cst_13 = arith.constant 1.200000e+01 : f32
    %47 = vector.broadcast %cst_13 : f32 to vector<16x128xf32>
    %48 = arith.subf %22, %47 : vector<16x128xf32>
    %cst_14 = arith.constant 0.0287356321 : f32
    %49 = vector.broadcast %cst_14 : f32 to vector<16x128xf32>
    %50 = arith.mulf %48, %49 : vector<16x128xf32>
    %51 = math.tanh %50 : vector<16x128xf32>
    %52 = arith.mulf %51, %51 : vector<16x128xf32>
    %cst_15 = arith.constant 1.000000e+00 : f32
    %53 = vector.broadcast %cst_15 : f32 to vector<16x128xf32>
    %54 = arith.subf %53, %52 : vector<16x128xf32>
    %55 = math.rsqrt %54 : vector<16x128xf32>
    %cst_16 = arith.constant 1.000000e+00 : f32
    %56 = vector.broadcast %cst_16 : f32 to vector<16x128xf32>
    %57 = arith.addf %56, %52 : vector<16x128xf32>
    %58 = arith.divf %51, %57 : vector<16x128xf32>
    %cst_17 = arith.constant 5.000000e-01 : f32
    %59 = vector.broadcast %cst_17 : f32 to vector<16x128xf32>
    %60 = arith.addf %59, %58 : vector<16x128xf32>
    %61 = arith.subf %60, %23 : vector<16x128xf32>
    %62 = vector.broadcast %4 : f32 to vector<16x128xf32>
    %63 = arith.mulf %55, %62 : vector<16x128xf32>
    %64 = arith.mulf %61, %63 : vector<16x128xf32>
    %65 = arith.select %14, %46, %64 : vector<16x128xi1>, vector<16x128xf32>
    %c0_18 = arith.constant 0 : index
    %c0_19 = arith.constant 0 : index
    %66 = vector.load %arg3[%c0_18, %c0_19] : memref<16x128xf32, #tpu.memory_space<vmem>>, vector<16x128xf32>
    tpu.vector_store %arg3[%c0_18, %c0_19], %65 {strides = array<i32>} : memref<16x128xf32, #tpu.memory_space<vmem>>, vector<16x128xf32>,
    return
  }
  func.func @transform_0(%arg0: i32) -> i32 {
    %c0_i32 = arith.constant 0 : i32
    %c0_i32_0 = arith.constant 0 : i32
    return %c0_i32 : i32
  }
  func.func @transform_1(%arg0: i32) -> (i32, i32) {
    %c0_i32 = arith.constant 0 : i32
    %c0_i32_0 = arith.constant 0 : i32
    return %arg0, %c0_i32 : i32, i32
  }
  func.func @transform_2(%arg0: i32) -> (i32, i32) {
    %c0_i32 = arith.constant 0 : i32
    %c0_i32_0 = arith.constant 0 : i32
    return %arg0, %c0_i32 : i32, i32
  }
}

</mosaic_0001>

<llo_original>
// kernel: tpu_custom_call.1
$region0: #{tpu_custom_call.1}
  #allocation0 [shape = 'u32[]', space=smem, size = 0x4, offset = 0x4, fixed_abs, tag = 'smem constant byte address 0x4 - core index']
  #allocation1 [shape = 'u32[144,128]{1,0:T(1,128)}', space=vmem, size = 0x12000, scoped, tag = 'internal scratch']
  %s0 = inlined_call_operand.hbm [shape: f32[4], index: 0, kind: input, shape index: {}]
  %s1 = inlined_call_operand.hbm [shape: f32[32,128], index: 1, kind: input, shape index: {}]
  %s2 = inlined_call_operand.hbm [shape: f32[32,128], index: 2, kind: output, shape index: {}]
  %s3 = sld [smem:[#allocation0]]
  $region49: #{tpu_custom_call.1} parent=0
    _
  %s5 = ssub.s32 1, %s3
  %s6 = scalar_select 0, %s5, %s3
  $region1: #{tpu_custom_call.1} parent=0
    #allocation2 [shape = 'u8[512]{0}', space=smem, size = 0x200, scoped, tag = 'input window, operand 0, single buffered']
    #allocation3 [shape = 's32[2]{0}', space=sflag, size = 0x8, scoped, tag = 'scoped memory for tpu_custom_call.1']
    #allocation4 [shape = 's32[2]{0}', space=sflag, size = 0x8, scoped, tag = 'scoped memory for tpu_custom_call.1']
    #allocation5 [shape = 's32[2]{0}', space=sflag, size = 0x8, scoped, tag = 'scoped memory for tpu_custom_call.1']
    #allocation6 [shape = 'u8[16384]{0}', space=vmem, size = 0x4000, scoped, tag = 'input window, operand 1']
    #allocation7 [shape = 'u8[16384]{0}', space=vmem, size = 0x4000, scoped, tag = 'output window, operand 0']
    %7 = vsyncpa [#allocation5], 0
    %8 = vsyncpa [#allocation3], 0
    %s9 = scalar_lea.sflag [#allocation3], 1
    %10 = vsyncpa %s9, 0
    %11 = vsyncpa [#allocation4], 0
    %s12 = scalar_lea.sflag [#allocation4], 1
    %13 = vsyncpa %s12, 0
    loop: start=0, step=1, limit=4
    $region2: #{tpu_custom_call.1} parent=1 // loop_pre_header
      _
    $region3: #{tpu_custom_call.1} parent=1 // loop_header
      %s15 = sphi 0, %s19
      %p16 = scmp.ge.s32.totalorder %s15, 4
      %s23 = sphi 0, %s23
      %s25 = sphi 0, %s23
      %s26 = sphi 0, %s25
      %s40 = sphi 0, %s26
      %s46 = sphi 0, %s48
      %s49 = sphi 0, %s46
      %s50 = sphi 0, %s49
      %s66 = sphi 0, %s50
      %s72 = sphi 0, %s74
      %s75 = sphi 0, %s72
      %s76 = sphi 0, %s75
      %s92 = sphi 0, %s76
    $region4: #{tpu_custom_call.1} parent=1 // loop_header_branch
      %18 = sbr.rel (%p16) target = $region8
    $region5: #{tpu_custom_call.1} parent=1 // loop_body
      %s20 = ssub.s32 %s15, 1
      %s21 = ssub.s32 %s15, 2
      %s22 = sadd.s32 %s15, 1
      %s24 = sadd.s32 %s23, 1
      %p27 = scmp.eq.s32.totalorder %s15, 1
      %p28 = scmp.ne.s32.totalorder %s23, %s25
      %p29 = scmp.eq.s32.totalorder %s15, 0
      %p30 = por %p28, %p29
      %p31 = scmp.ne.s32.totalorder %s23, %s25
      %p32 = scmp.eq.s32.totalorder %s20, 1
      %p33 = por %p31, %p32
      %p34 = scmp.ne.s32.totalorder %s25, %s26
      %p35 = scmp.eq.s32.totalorder %s20, 0
      %p36 = por %p34, %p35
      %p37 = scmp.ne.s32.totalorder %s25, %s26
      %p38 = scmp.eq.s32.totalorder %s21, 1
      %p39 = por %p37, %p38
      %p41 = scmp.ne.s32.totalorder %s26, %s40
      %p42 = scmp.eq.s32.totalorder %s21, 0
      %p43 = por %p41, %p42
      %s44 = ssub.s32 %s15, %s22
      %p45 = scmp.eq.s32.totalorder %s44, 0
      %s47 = sadd.s32 %s46, 1
      %s48 = scalar_select %p45, %s46, %s47
      %p51 = pneg %p45
      %p52 = scmp.eq.s32.totalorder %s15, 1
      %p53 = por %p51, %p52
      %p54 = scmp.ne.s32.totalorder %s46, %s49
      %p55 = scmp.eq.s32.totalorder %s15, 0
      %p56 = por %p54, %p55
      %p57 = scmp.ne.s32.totalorder %s46, %s49
      %p58 = scmp.eq.s32.totalorder %s20, 1
      %p59 = por %p57, %p58
      %p60 = scmp.ne.s32.totalorder %s49, %s50
      %p61 = scmp.eq.s32.totalorder %s20, 0
      %p62 = por %p60, %p61
      %p63 = scmp.ne.s32.totalorder %s49, %s50
      %p64 = scmp.eq.s32.totalorder %s21, 1
      %p65 = por %p63, %p64
      %p67 = scmp.ne.s32.totalorder %s50, %s66
      %p68 = scmp.eq.s32.totalorder %s21, 0
      %p69 = por %p67, %p68
      %s70 = ssub.s32 %s15, %s22
      %p71 = scmp.eq.s32.totalorder %s70, 0
      %s73 = sadd.s32 %s72, 1
      %s74 = scalar_select %p71, %s72, %s73
      %p77 = pneg %p71
      %p78 = scmp.eq.s32.totalorder %s15, 1
      %p79 = por %p77, %p78
      %p80 = scmp.ne.s32.totalorder %s72, %s75
      %p81 = scmp.eq.s32.totalorder %s15, 0
      %p82 = por %p80, %p81
      %p83 = scmp.ne.s32.totalorder %s72, %s75
      %p84 = scmp.eq.s32.totalorder %s20, 1
      %p85 = por %p83, %p84
      %p86 = scmp.ne.s32.totalorder %s75, %s76
      %p87 = scmp.eq.s32.totalorder %s20, 0
      %p88 = por %p86, %p87
      %p89 = scmp.ne.s32.totalorder %s75, %s76
      %p90 = scmp.eq.s32.totalorder %s21, 1
      %p91 = por %p89, %p90
      %p93 = scmp.ne.s32.totalorder %s76, %s92
      %p94 = scmp.eq.s32.totalorder %s21, 0
      %p95 = por %p93, %p94
      %p96 = scmp.le.s32.totalorder 1, %s15
      %p97 = scmp.lt.s32.totalorder %s15, 3
      %p98 = pnand %p96, %p97
      %p99 = pneg %p98
      // Predicated region
      $region9: #{tpu_custom_call.1} parent=5 // pred_check
        _
      $region10: #{tpu_custom_call.1} parent=5 // pred_check_branch
        %101 = sbr.rel (%p98) target = $region12
      $region11: #{tpu_custom_call.1} parent=5 // pred_region
        %s102 = ssub.s32 %s15, 1
        // Predicated region
        $region13: #{tpu_custom_call.1} parent=11 // pred_check
          %p103 = pneg %p36
        $region14: #{tpu_custom_call.1} parent=11 // pred_check_branch
          %105 = sbr.rel (%p103) target = $region16
        $region15: #{tpu_custom_call.1} parent=11 // pred_region
          %s107 = ssub.s32 16, 16
          %108 = vsyncadd [#allocation5], %s107
          %111 = dma.hbm_to_smem %s0, 16, [#allocation2], [#allocation5]
        $region16: #{tpu_custom_call.1} parent=11 // pred_fallthru
          _
      $region12: #{tpu_custom_call.1} parent=5 // pred_fallthru
        _
      %p112 = scmp.lt.s32.totalorder %s15, 2
      // Predicated region
      $region17: #{tpu_custom_call.1} parent=5 // pred_check
        %p113 = pneg %p112
      $region18: #{tpu_custom_call.1} parent=5 // pred_check_branch
        %115 = sbr.rel (%p113) target = $region20
      $region19: #{tpu_custom_call.1} parent=5 // pred_region
        // Predicated region
        $region21: #{tpu_custom_call.1} parent=19 // pred_check
          %p116 = pneg %p56
        $region22: #{tpu_custom_call.1} parent=19 // pred_check_branch
          %118 = sbr.rel (%p116) target = $region24
        $region23: #{tpu_custom_call.1} parent=19 // pred_region
          %s119 = sand.u32 %s46, 1
          %s120 = scalar_lea.sflag [#allocation3], %s119
          %s121 = sand.u32 %s46, 1
          %s122 = smul.addr %s121, 16
          %s123 = scalar_lea.vmem [#allocation6], %s122
          %s124 = smul.u32 2, %s15
          %s126 = ssub.s32 256, 256
          %127 = vsyncadd %s120, %s126
          %s128 = smul.addr %s124, 128
          %s129 = scalar_lea.hbm %s1, %s128
          %s130 = sshll.u32 %s123, 4
          %s131 = int_to_ptr.vmem [resolvable:$true] %s130
          %136 = dma.hbm_to_vmem [thread:$0]  %s129, 256, %s131, %s120, 128, 128, 8
        $region24: #{tpu_custom_call.1} parent=19 // pred_fallthru
          _
      $region20: #{tpu_custom_call.1} parent=5 // pred_fallthru
        _
      %p137 = scmp.le.s32.totalorder 1, %s15
      %p138 = scmp.lt.s32.totalorder %s15, 3
      %p139 = pnand %p137, %p138
      %p140 = pneg %p139
      // Predicated region
      $region25: #{tpu_custom_call.1} parent=5 // pred_check
        _
      $region26: #{tpu_custom_call.1} parent=5 // pred_check_branch
        %142 = sbr.rel (%p139) target = $region28
      $region27: #{tpu_custom_call.1} parent=5 // pred_region
        %s143 = ssub.s32 %s15, 1
        // Predicated region
        $region29: #{tpu_custom_call.1} parent=27 // pred_check
          %p144 = pneg %p36
        $region30: #{tpu_custom_call.1} parent=27 // pred_check_branch
          %146 = sbr.rel (%p144) target = $region32
        $region31: #{tpu_custom_call.1} parent=27 // pred_region
          %147 = dma.done [#allocation5], 16
        $region32: #{tpu_custom_call.1} parent=27 // pred_fallthru
          _
        %s148 = sand.u32 %s49, 1
        %s149 = scalar_lea.sflag [#allocation3], %s148
        %s150 = sand.u32 %s49, 1
        %s151 = smul.addr %s150, 16
        %s152 = scalar_lea.vmem [#allocation6], %s151
        // Predicated region
        $region33: #{tpu_custom_call.1} parent=27 // pred_check
          %p153 = pneg %p62
        $region34: #{tpu_custom_call.1} parent=27 // pred_check_branch
          %155 = sbr.rel (%p153) target = $region36
        $region35: #{tpu_custom_call.1} parent=27 // pred_region
          %156 = dma.done %s149, 256
        $region36: #{tpu_custom_call.1} parent=27 // pred_fallthru
          _
        %157 = sfence
        %p158 = pneg %p36
        %p159 = pneg %p33
        %s160 = sand.u32 %s49, 1
        %s161 = scalar_lea.sflag [#allocation3], %s160
        %s162 = sand.u32 %s49, 1
        %s163 = smul.addr %s162, 16
        %s164 = scalar_lea.vmem [#allocation6], %s163
        %p165 = pneg %p62
        %p166 = pneg %p59
        %p167 = pneg %p88
        %p168 = pneg %p85
        %s169 = sand.u32 %s75, 1
        %s170 = scalar_lea.sflag [#allocation4], %s169
        %s171 = sand.u32 %s75, 1
        %s172 = smul.addr %s171, 16
        %s173 = scalar_lea.vmem [#allocation7], %s172
        %s174 = smul.u32 2, %s20
        %s175 = smul.u32 2, %s20
        %s176 = sld [smem:[#allocation2]]
        %s177 = sld [smem:[#allocation2 + $0x1]]
        %s178 = sld [smem:[#allocation2 + $0x2]]
        %s179 = sld [smem:[#allocation2 + $0x3]]
        %v180 = vstv %s179
        %v181 = vrcp.pop %v180
        %s182 = vtos %v181
        %s183 = smul.f32 %s176, 0.5
        %s184 = smul.f32 %s178, -60.0
        %s185 = sadd.f32 %s184, 60.0
        %v186 = vld [vmem:[%s152] sm:$0xff]
        %v187 = vld [vmem:[%s152 + $0x8] sm:$0xff]
        %v188 = vlaneseq
        %v189 = vand.u32 %v188, 127
        %v190 = vand.u32 %v189, 1
        %vm191 = vcmp.eq.s32.totalorder %v190, 0
        %192 = vrot.lane.b32.xlu0 %v186, 1
        %v193 = vpop.permute.xlu0 %192
        %194 = vrot.lane.b32.xlu0 %v187, 1
        %v195 = vpop.permute.xlu0 %194
        %196 = vrot.lane.b32.xlu0 %v186, 127
        %v197 = vpop.permute.xlu0 %196
        %198 = vrot.lane.b32.xlu0 %v187, 127
        %v199 = vpop.permute.xlu0 %198
        %200 = vrot.lane.b32.xlu0 %v189, 1
        %v201 = vpop.permute.xlu0 %200
        %v202 = vxor.u32 %v189, 1
        %vm203 = vcmp.eq.s32.totalorder %v201, %v202
        %v204 = vsel %vm203, %v193, %v197
        %v205 = vsel %vm203, %v195, %v199
        %v206 = vsel %vm191, %v186, %v204
        %v207 = vsel %vm191, %v187, %v205
        %v208 = vsel %vm191, %v204, %v186
        %v209 = vsel %vm191, %v205, %v187
        %v210 = vsub.f32 %v206, -1.2
        %v211 = vsub.f32 %v207, -1.2
        %v212 = vmul.f32 %v210, 0.055555556
        %v213 = vmul.f32 %v211, 0.055555556
        %v214 = vtanh.pop %v212
        %v215 = vtanh.pop %v213
        %v216 = vstv %s183
        %v217 = vmul.f32 %v216, %v214
        %v218 = vmul.f32 %v216, %v215
        %v219 = vadd.f32 %v216, %v217
        %v220 = vadd.f32 %v216, %v218
        %v221 = vstv %s177
        %v222 = vmul.f32 %v221, %v208
        %v223 = vmul.f32 %v221, %v209
        %v224 = vmul.f32 %v219, 120.0
        %v225 = vmul.f32 %v220, 120.0
        %v226 = vmul.f32 %v222, -84.0
        %v227 = vmul.f32 %v223, -84.0
        %v228 = vadd.f32 %v224, %v226
        %v229 = vadd.f32 %v225, %v227
        %v230 = vstv %s185
        %v231 = vadd.f32 %v228, %v230
        %v232 = vadd.f32 %v229, %v230
        %v233 = vadd.f32 %v219, %v222
        %v234 = vadd.f32 %v220, %v223
        %v235 = vstv %s178
        %v236 = vadd.f32 %v233, %v235
        %v237 = vadd.f32 %v234, %v235
        %v238 = vmul.f32 %v236, %v206
        %v239 = vmul.f32 %v237, %v207
        %v240 = vsub.f32 %v231, %v238
        %v241 = vsub.f32 %v232, %v239
        %v242 = vsub.f32 %v206, 12.0
        %v243 = vsub.f32 %v207, 12.0
        %v244 = vmul.f32 %v242, 0.028735632
        %v245 = vmul.f32 %v243, 0.028735632
        %v246 = vtanh.pop %v244
        %v247 = vtanh.pop %v245
        %v248 = vmul.f32 %v246, %v246
        %v249 = vmul.f32 %v247, %v247
        %v250 = vsub.f32 1.0, %v248
        %v251 = vsub.f32 1.0, %v249
        %v252 = vrsqrt.pop %v250
        %v253 = vrsqrt.pop %v251
        %v254 = vadd.f32 %v248, 1.0
        %v255 = vadd.f32 %v249, 1.0
        %v256 = vrcp.pop %v254
        %v257 = vmul.f32 %v246, %v256
        %v258 = vrcp.pop %v255
        %v259 = vmul.f32 %v247, %v258
        %v260 = vadd.f32 %v257, 0.5
        %v261 = vadd.f32 %v259, 0.5
        %v262 = vsub.f32 %v260, %v208
        %v263 = vsub.f32 %v261, %v209
        %v264 = vstv %s182
        %v265 = vmul.f32 %v252, %v264
        %v266 = vmul.f32 %v253, %v264
        %v267 = vmul.f32 %v262, %v265
        %v268 = vmul.f32 %v263, %v266
        %v269 = vsel %vm191, %v240, %v267
        %v270 = vsel %vm191, %v241, %v268
        %271 = vst [vmem:[%s173] sm:$0xff] %v269
        %272 = vst [vmem:[%s173 + $0x8] sm:$0xff] %v270
        %s273 = sand.u32 %s75, 1
        %s274 = scalar_lea.sflag [#allocation4], %s273
        %s275 = sand.u32 %s75, 1
        %s276 = smul.addr %s275, 16
        %s277 = scalar_lea.vmem [#allocation7], %s276
        // Predicated region
        $region37: #{tpu_custom_call.1} parent=27 // pred_check
          %p278 = pneg %p85
        $region38: #{tpu_custom_call.1} parent=27 // pred_check_branch
          %280 = sbr.rel (%p278) target = $region40
        $region39: #{tpu_custom_call.1} parent=27 // pred_region
          %s281 = smul.u32 2, %s20
          %s283 = ssub.s32 256, 256
          %284 = vsyncadd %s274, %s283
          %s285 = smul.addr %s281, 128
          %s286 = scalar_lea.hbm %s2, %s285
          %s287 = sshll.u32 %s277, 4
          %s288 = int_to_ptr.vmem [resolvable:$true] %s287
          %293 = dma.vmem_to_hbm [thread:$0]  %s288, 256, %s286, %s274, 128, 128, 8
        $region40: #{tpu_custom_call.1} parent=27 // pred_fallthru
          _
      $region28: #{tpu_custom_call.1} parent=5 // pred_fallthru
        _
      %p294 = scmp.le.s32.totalorder 2, %s15
      // Predicated region
      $region41: #{tpu_custom_call.1} parent=5 // pred_check
        %p295 = pneg %p294
      $region42: #{tpu_custom_call.1} parent=5 // pred_check_branch
        %297 = sbr.rel (%p295) target = $region44
      $region43: #{tpu_custom_call.1} parent=5 // pred_region
        %s298 = ssub.s32 %s15, 2
        // Predicated region
        $region45: #{tpu_custom_call.1} parent=43 // pred_check
          %p299 = pneg %p91
        $region46: #{tpu_custom_call.1} parent=43 // pred_check_branch
          %301 = sbr.rel (%p299) target = $region48
        $region47: #{tpu_custom_call.1} parent=43 // pred_region
          %s302 = sand.u32 %s76, 1
          %s303 = scalar_lea.sflag [#allocation4], %s302
          %s304 = sand.u32 %s76, 1
          %s305 = smul.addr %s304, 16
          %s306 = scalar_lea.vmem [#allocation7], %s305
          %307 = dma.done %s303, 256
        $region48: #{tpu_custom_call.1} parent=43 // pred_fallthru
          _
      $region44: #{tpu_custom_call.1} parent=5 // pred_fallthru
        _
    $region6: #{tpu_custom_call.1} parent=1 // loop_footer
      %s19 = sadd.s32 1, %s15
    $region7: #{tpu_custom_call.1} parent=1 // loop_footer_branch
      %14 = sbr.rel target = $region3
    $region8: #{tpu_custom_call.1} parent=1 // loop_exit
      _
    %308 = vsyncpa [#allocation3], 1
    %s309 = scalar_lea.sflag [#allocation3], 1
    %310 = vsyncpa %s309, 1
    %311 = vsyncpa [#allocation4], 1
    %s312 = scalar_lea.sflag [#allocation4], 1
    %313 = vsyncpa %s312, 1
    %314 = vsyncpa [#allocation5], 1
    %s315 = scalar_lea.sflag [#allocation5], 1
    %316 = vsyncpa %s315, 1

</llo_original>
